<compile_context>
chip_gen: v5e
topology: v5e:2x2
jax: 0.10.0
libtpu: 0.0.40
codegen_flags: <defaults>
</compile_context>

<pallas_src>
import jax
import jax.numpy as jnp
from jax.experimental import pallas as pl
from jax.experimental.pallas import tpu as pltpu


def _lstm_fc_kernel(proj0_ref, wf_ref, b1_ref, wfc_ref, bfc_ref, out_ref):
    T, B, G = proj0_ref.shape          # G = 4H (gate width)
    H = G // 4

    wf = wf_ref[...]                                    # (2H, 8H) bf16 fused recurrence weight
    b1 = jnp.broadcast_to(b1_ref[...], (B, G))          # hoisted: no per-step broadcast_in_dim

    def cell(gates, c):
        # PyTorch gate order along the 4H lanes: i, f, g, o.
        # One sigmoid over the full 128-lane gates vreg + one tanh on the g slice.
        sig = jax.nn.sigmoid(gates)                      # (B, 4H)
        g = jnp.tanh(gates[:, 2 * H:3 * H])              # (B, H)
        i = sig[:, 0 * H:1 * H]
        f = sig[:, 1 * H:2 * H]
        o = sig[:, 3 * H:4 * H]
        c_new = f * c + i * g
        return o * jnp.tanh(c_new), c_new

    zeros_h = jnp.zeros((B, H), jnp.float32)

    # Layer-0 step 0: h0_{-1} = 0, so its gates are exactly the precomputed projection.
    h0, c0 = cell(proj0_ref[0], zeros_h)
    h1, c1 = zeros_h, zeros_h

    # Fused recurrence (layer 1 one step behind layer 0). Per step, one MXU op:
    #   fused[:, :4H]  = h0_t @ whh0                    -> layer-0 recurrent term for step t+1
    #   fused[:, 4H:]  = h0_t @ wih1 + h1_{t-1} @ whh1  -> layer-1 gates for step t
    for t in range(T):                                   # T is small & static -> unrolled
        hh = jnp.concatenate([h0, h1], axis=-1).astype(jnp.bfloat16)   # (B, 2H), vreg-resident
        fused = jnp.dot(hh, wf, preferred_element_type=jnp.float32)    # (B, 8H)
        h1, c1 = cell(fused[:, G:] + b1, c1)                           # layer-1 step t
        if t + 1 < T:                                                  # last iter = drain
            h0, c0 = cell(proj0_ref[t + 1] + fused[:, :G], c0)         # layer-0 step t+1

    # x[:, -1, :] of the stacked-LSTM output is h1 after the last step -> lane-dense padded FC.
    out_ref[...] = (jnp.dot(h1.astype(jnp.bfloat16), wfc_ref[...],
                            preferred_element_type=jnp.float32) + bfc_ref[...])


def stacked_lstm_forward(indices, params):
    """indices: (B, T) int32 in [0, num_embeddings). Returns (B, num_classes) f32."""
    B, T = indices.shape
    H = params["whh0"].shape[0]
    C = params["wfc"].shape[1]

    # ---- tiny one-time weight prep (plain JAX, folded into the same jit) ----
    # Embedding folded into the layer-0 input projection: row r of (emb @ wih0) is the
    # x-projection of token r (gather-then-matmul == matmul-then-gather for row gathers).
    proj_table = jnp.dot(params["embedding"].astype(jnp.float32), params["wih0"],
                         precision=jax.lax.Precision.HIGHEST)          # (V, 4H)
    # Fused recurrence weight  W = [[whh0, wih1], [0, whh1]]  (2H, 8H), bf16 for the MXU.
    wf = jnp.concatenate(
        [jnp.concatenate([params["whh0"], params["wih1"]], axis=1),
         jnp.concatenate([jnp.zeros((H, 4 * H), jnp.float32), params["whh1"]], axis=1)],
        axis=0).astype(jnp.bfloat16)                                    # (2H, 8H)
    # Lane-dense FC output: pad the class dim up to a multiple of 128.
    c_pad = max(128, ((C + 127) // 128) * 128)
    wfc_pad = (jnp.zeros((H, c_pad), jnp.float32)
               .at[:, :C].set(params["wfc"]).astype(jnp.bfloat16))
    bfc_pad = jnp.zeros((1, c_pad), jnp.float32).at[:, :C].set(params["bfc"])

    # Pad the batch to the f32 sublane tile (8 rows) so every slice/store is (8,128) aligned.
    b_pad = max(8, ((B + 7) // 8) * 8)
    idx = jnp.zeros((b_pad, T), jnp.int32).at[:B, :].set(indices.astype(jnp.int32))
    # Time-major per-step layer-0 input projection + bias, shipped as a (T, Bp, 4H) f32 slab.
    # NOTE: out-of-range indices clamp here (PyTorch's Embedding would raise) — keep idx < V.
    proj0 = proj_table[idx.T] + params["b0"]                            # (T, Bp, 4H)

    vmem = pl.BlockSpec(memory_space=pltpu.MemorySpace.VMEM)
    # Weights + activations total ~100 KiB -> fully VMEM resident on v5e/v6e/v7x; no grid.
    out = pl.pallas_call(
        _lstm_fc_kernel,
        out_shape=jax.ShapeDtypeStruct((b_pad, c_pad), jnp.float32),
        in_specs=[vmem] * 5,
        out_specs=vmem,
    )(proj0, wf, params["b1"], wfc_pad, bfc_pad)
    return out[:B, :C]


def init_params(key, seq_len, num_classes, num_hidden, embed_dim=8):
    """Deterministic synthetic init mirroring the PyTorch module shapes.

    PyTorch stores weight_ih_l{k} as (4H, in) and weight_hh_l{k} as (4H, H); here they are
    kept pre-transposed so the kernel computes x @ W. The two LSTM biases per layer are
    sampled separately (like b_ih and b_hh) and summed.
    """
    H, C, E = num_hidden, num_classes, embed_dim
    ks = jax.random.split(key, 11)

    # Embedding: xavier_uniform over (num_embeddings=seq_len, embed_dim), as in the module.
    limit_emb = jnp.sqrt(6.0 / (seq_len + E))
    embedding = jax.random.uniform(ks[0], (seq_len, E), jnp.float32,
                                   -limit_emb, limit_emb)

    s = 1.0 / jnp.sqrt(jnp.float32(H))   # PyTorch LSTM / Linear default uniform bound scale
    wih0 = jax.random.uniform(ks[1], (E, 4 * H), jnp.float32, -s, s)
    whh0 = jax.random.uniform(ks[2], (H, 4 * H), jnp.float32, -s, s)
    b0 = (jax.random.uniform(ks[3], (1, 4 * H), jnp.float32, -s, s)
          + jax.random.uniform(ks[4], (1, 4 * H), jnp.float32, -s, s))   # b_ih + b_hh
    wih1 = jax.random.uniform(ks[5], (H, 4 * H), jnp.float32, -s, s)
    whh1 = jax.random.uniform(ks[6], (H, 4 * H), jnp.float32, -s, s)
    b1 = (jax.random.uniform(ks[7], (1, 4 * H), jnp.float32, -s, s)
          + jax.random.uniform(ks[8], (1, 4 * H), jnp.float32, -s, s))   # b_ih + b_hh
    wfc = jax.random.uniform(ks[9], (H, C), jnp.float32, -s, s)
    bfc = jax.random.uniform(ks[10], (1, C), jnp.float32, -s, s)

    return dict(embedding=embedding,
                wih0=wih0, whh0=whh0, b0=b0,
                wih1=wih1, whh1=whh1, b1=b1,
                wfc=wfc, bfc=bfc)


if __name__ == "__main__":
    # Small shapes consistent with the module: batch=4, seq_len=8, hidden=32, classes=16
    B, seq_len, num_hidden, num_classes = 4, 8, 32, 16

    key = jax.random.PRNGKey(0)
    kp, ki = jax.random.split(key)
    params = init_params(kp, seq_len, num_classes, num_hidden)

    indices = jax.random.randint(ki, (B, seq_len), 0, seq_len, dtype=jnp.int32)

    forward = jax.jit(stacked_lstm_forward)
    logits = forward(indices, params)
    jax.block_until_ready(logits)

    assert logits.shape == (B, num_classes)
    assert logits.dtype == jnp.float32
    print("KERNEL_OK")
</pallas_src>

<mosaic_0001>
module attributes {stable_mosaic.version = 11 : i64} {
  func.func @_lstm_fc_kernel(%arg0: memref<8x8x128xf32, #tpu.memory_space<vmem>>, %arg1: memref<64x256xbf16, #tpu.memory_space<vmem>>, %arg2: memref<1x128xf32, #tpu.memory_space<vmem>>, %arg3: memref<32x128xbf16, #tpu.memory_space<vmem>>, %arg4: memref<1x128xf32, #tpu.memory_space<vmem>>, %arg5: memref<8x128xf32, #tpu.memory_space<vmem>>) attributes {dimension_semantics = [], scalar_prefetch = 0 : i64, scratch_operands = 0 : i64, tpu.core_type = #tpu.core_type<tc>} {
    %c0 = arith.constant 0 : index
    %c0_0 = arith.constant 0 : index
    %0 = vector.load %arg1[%c0, %c0_0] : memref<64x256xbf16, #tpu.memory_space<vmem>>, vector<64x256xbf16>
    %c0_1 = arith.constant 0 : index
    %c0_2 = arith.constant 0 : index
    %1 = vector.load %arg2[%c0_1, %c0_2] : memref<1x128xf32, #tpu.memory_space<vmem>>, vector<1x128xf32>
    %2 = vector.shape_cast %1 : vector<1x128xf32> to vector<1x128xf32>
    %3 = vector.broadcast %2 : vector<1x128xf32> to vector<8x128xf32>
    %cst = arith.constant 0.000000e+00 : f32
    %4 = vector.broadcast %cst : f32 to vector<8x32xf32>
    %c0_3 = arith.constant 0 : index
    %c0_4 = arith.constant 0 : index
    %c0_5 = arith.constant 0 : index
    %5 = vector.load %arg0[%c0_3, %c0_4, %c0_5] : memref<8x8x128xf32, #tpu.memory_space<vmem>>, vector<1x8x128xf32>
    %6 = vector.shape_cast %5 : vector<1x8x128xf32> to vector<8x128xf32>
    %7 = arith.negf %6 : vector<8x128xf32>
    %8 = math.exp %7 : vector<8x128xf32>
    %cst_6 = arith.constant 1.000000e+00 : f32
    %9 = vector.broadcast %cst_6 : f32 to vector<8x128xf32>
    %10 = arith.addf %9, %8 : vector<8x128xf32>
    %11 = arith.divf %9, %10 : vector<8x128xf32>
    %12 = vector.extract_strided_slice %6 {offsets = [0, 64], sizes = [8, 32], strides = [1, 1]} : vector<8x128xf32> to vector<8x32xf32>
    %13 = math.tanh %12 : vector<8x32xf32>
    %14 = vector.extract_strided_slice %11 {offsets = [0, 0], sizes = [8, 32], strides = [1, 1]} : vector<8x128xf32> to vector<8x32xf32>
    %15 = vector.extract_strided_slice %11 {offsets = [0, 32], sizes = [8, 32], strides = [1, 1]} : vector<8x128xf32> to vector<8x32xf32>
    %16 = vector.extract_strided_slice %11 {offsets = [0, 96], sizes = [8, 32], strides = [1, 1]} : vector<8x128xf32> to vector<8x32xf32>
    %17 = arith.mulf %15, %4 : vector<8x32xf32>
    %18 = arith.mulf %14, %13 : vector<8x32xf32>
    %19 = arith.addf %17, %18 : vector<8x32xf32>
    %20 = math.tanh %19 : vector<8x32xf32>
    %21 = arith.mulf %16, %20 : vector<8x32xf32>
    %22 = tpu.concatenate %21, %4 in 1 : vector<8x32xf32>, vector<8x32xf32> -> vector<8x64xf32>
    %23 = arith.truncf %22 : vector<8x64xf32> to vector<8x64xbf16>
    %cst_7 = arith.constant dense<0.000000e+00> : vector<8x256xf32>
    %24 = tpu.matmul %23, %0, %cst_7 {dimension_numbers = #tpu.dot_dimension_numbers<[1], [0], [0], [1], [0, 0, 1, 1], [], []>} : vector<8x64xbf16>, vector<64x256xbf16>, vector<8x256xf32> -> vector<8x256xf32>
    %25 = vector.extract_strided_slice %24 {offsets = [0, 128], sizes = [8, 128], strides = [1, 1]} : vector<8x256xf32> to vector<8x128xf32>
    %26 = arith.addf %25, %3 : vector<8x128xf32>
    %27 = arith.negf %26 : vector<8x128xf32>
    %28 = math.exp %27 : vector<8x128xf32>
    %cst_8 = arith.constant 1.000000e+00 : f32
    %29 = vector.broadcast %cst_8 : f32 to vector<8x128xf32>
    %30 = arith.addf %29, %28 : vector<8x128xf32>
    %31 = arith.divf %29, %30 : vector<8x128xf32>
    %32 = vector.extract_strided_slice %26 {offsets = [0, 64], sizes = [8, 32], strides = [1, 1]} : vector<8x128xf32> to vector<8x32xf32>
    %33 = math.tanh %32 : vector<8x32xf32>
    %34 = vector.extract_strided_slice %31 {offsets = [0, 0], sizes = [8, 32], strides = [1, 1]} : vector<8x128xf32> to vector<8x32xf32>
    %35 = vector.extract_strided_slice %31 {offsets = [0, 32], sizes = [8, 32], strides = [1, 1]} : vector<8x128xf32> to vector<8x32xf32>
    %36 = vector.extract_strided_slice %31 {offsets = [0, 96], sizes = [8, 32], strides = [1, 1]} : vector<8x128xf32> to vector<8x32xf32>
    %37 = arith.mulf %35, %4 : vector<8x32xf32>
    %38 = arith.mulf %34, %33 : vector<8x32xf32>
    %39 = arith.addf %37, %38 : vector<8x32xf32>
    %40 = math.tanh %39 : vector<8x32xf32>
    %41 = arith.mulf %36, %40 : vector<8x32xf32>
    %c1 = arith.constant 1 : index
    %c0_9 = arith.constant 0 : index
    %c0_10 = arith.constant 0 : index
    %42 = vector.load %arg0[%c1, %c0_9, %c0_10] : memref<8x8x128xf32, #tpu.memory_space<vmem>>, vector<1x8x128xf32>
    %43 = vector.shape_cast %42 : vector<1x8x128xf32> to vector<8x128xf32>
    %44 = vector.extract_strided_slice %24 {offsets = [0, 0], sizes = [8, 128], strides = [1, 1]} : vector<8x256xf32> to vector<8x128xf32>
    %45 = arith.addf %43, %44 : vector<8x128xf32>
    %46 = arith.negf %45 : vector<8x128xf32>
    %47 = math.exp %46 : vector<8x128xf32>
    %cst_11 = arith.constant 1.000000e+00 : f32
    %48 = vector.broadcast %cst_11 : f32 to vector<8x128xf32>
    %49 = arith.addf %48, %47 : vector<8x128xf32>
    %50 = arith.divf %48, %49 : vector<8x128xf32>
    %51 = vector.extract_strided_slice %45 {offsets = [0, 64], sizes = [8, 32], strides = [1, 1]} : vector<8x128xf32> to vector<8x32xf32>
    %52 = math.tanh %51 : vector<8x32xf32>
    %53 = vector.extract_strided_slice %50 {offsets = [0, 0], sizes = [8, 32], strides = [1, 1]} : vector<8x128xf32> to vector<8x32xf32>
    %54 = vector.extract_strided_slice %50 {offsets = [0, 32], sizes = [8, 32], strides = [1, 1]} : vector<8x128xf32> to vector<8x32xf32>
    %55 = vector.extract_strided_slice %50 {offsets = [0, 96], sizes = [8, 32], strides = [1, 1]} : vector<8x128xf32> to vector<8x32xf32>
    %56 = arith.mulf %54, %19 : vector<8x32xf32>
    %57 = arith.mulf %53, %52 : vector<8x32xf32>
    %58 = arith.addf %56, %57 : vector<8x32xf32>
    %59 = math.tanh %58 : vector<8x32xf32>
    %60 = arith.mulf %55, %59 : vector<8x32xf32>
    %61 = tpu.concatenate %60, %41 in 1 : vector<8x32xf32>, vector<8x32xf32> -> vector<8x64xf32>
    %62 = arith.truncf %61 : vector<8x64xf32> to vector<8x64xbf16>
    %cst_12 = arith.constant dense<0.000000e+00> : vector<8x256xf32>
    %63 = tpu.matmul %62, %0, %cst_12 {dimension_numbers = #tpu.dot_dimension_numbers<[1], [0], [0], [1], [0, 0, 1, 1], [], []>} : vector<8x64xbf16>, vector<64x256xbf16>, vector<8x256xf32> -> vector<8x256xf32>
    %64 = vector.extract_strided_slice %63 {offsets = [0, 128], sizes = [8, 128], strides = [1, 1]} : vector<8x256xf32> to vector<8x128xf32>
    %65 = arith.addf %64, %3 : vector<8x128xf32>
    %66 = arith.negf %65 : vector<8x128xf32>
    %67 = math.exp %66 : vector<8x128xf32>
    %cst_13 = arith.constant 1.000000e+00 : f32
    %68 = vector.broadcast %cst_13 : f32 to vector<8x128xf32>
    %69 = arith.addf %68, %67 : vector<8x128xf32>
    %70 = arith.divf %68, %69 : vector<8x128xf32>
    %71 = vector.extract_strided_slice %65 {offsets = [0, 64], sizes = [8, 32], strides = [1, 1]} : vector<8x128xf32> to vector<8x32xf32>
    %72 = math.tanh %71 : vector<8x32xf32>
    %73 = vector.extract_strided_slice %70 {offsets = [0, 0], sizes = [8, 32], strides = [1, 1]} : vector<8x128xf32> to vector<8x32xf32>
    %74 = vector.extract_strided_slice %70 {offsets = [0, 32], sizes = [8, 32], strides = [1, 1]} : vector<8x128xf32> to vector<8x32xf32>
    %75 = vector.extract_strided_slice %70 {offsets = [0, 96], sizes = [8, 32], strides = [1, 1]} : vector<8x128xf32> to vector<8x32xf32>
    %76 = arith.mulf %74, %39 : vector<8x32xf32>
    %77 = arith.mulf %73, %72 : vector<8x32xf32>
    %78 = arith.addf %76, %77 : vector<8x32xf32>
    %79 = math.tanh %78 : vector<8x32xf32>
    %80 = arith.mulf %75, %79 : vector<8x32xf32>
    %c2 = arith.constant 2 : index
    %c0_14 = arith.constant 0 : index
    %c0_15 = arith.constant 0 : index
    %81 = vector.load %arg0[%c2, %c0_14, %c0_15] : memref<8x8x128xf32, #tpu.memory_space<vmem>>, vector<1x8x128xf32>
    %82 = vector.shape_cast %81 : vector<1x8x128xf32> to vector<8x128xf32>
    %83 = vector.extract_strided_slice %63 {offsets = [0, 0], sizes = [8, 128], strides = [1, 1]} : vector<8x256xf32> to vector<8x128xf32>
    %84 = arith.addf %82, %83 : vector<8x128xf32>
    %85 = arith.negf %84 : vector<8x128xf32>
    %86 = math.exp %85 : vector<8x128xf32>
    %cst_16 = arith.constant 1.000000e+00 : f32
    %87 = vector.broadcast %cst_16 : f32 to vector<8x128xf32>
    %88 = arith.addf %87, %86 : vector<8x128xf32>
    %89 = arith.divf %87, %88 : vector<8x128xf32>
    %90 = vector.extract_strided_slice %84 {offsets = [0, 64], sizes = [8, 32], strides = [1, 1]} : vector<8x128xf32> to vector<8x32xf32>
    %91 = math.tanh %90 : vector<8x32xf32>
    %92 = vector.extract_strided_slice %89 {offsets = [0, 0], sizes = [8, 32], strides = [1, 1]} : vector<8x128xf32> to vector<8x32xf32>
    %93 = vector.extract_strided_slice %89 {offsets = [0, 32], sizes = [8, 32], strides = [1, 1]} : vector<8x128xf32> to vector<8x32xf32>
    %94 = vector.extract_strided_slice %89 {offsets = [0, 96], sizes = [8, 32], strides = [1, 1]} : vector<8x128xf32> to vector<8x32xf32>
    %95 = arith.mulf %93, %58 : vector<8x32xf32>
    %96 = arith.mulf %92, %91 : vector<8x32xf32>
    %97 = arith.addf %95, %96 : vector<8x32xf32>
    %98 = math.tanh %97 : vector<8x32xf32>
    %99 = arith.mulf %94, %98 : vector<8x32xf32>
    %100 = tpu.concatenate %99, %80 in 1 : vector<8x32xf32>, vector<8x32xf32> -> vector<8x64xf32>
    %101 = arith.truncf %100 : vector<8x64xf32> to vector<8x64xbf16>
    %cst_17 = arith.constant dense<0.000000e+00> : vector<8x256xf32>
    %102 = tpu.matmul %101, %0, %cst_17 {dimension_numbers = #tpu.dot_dimension_numbers<[1], [0], [0], [1], [0, 0, 1, 1], [], []>} : vector<8x64xbf16>, vector<64x256xbf16>, vector<8x256xf32> -> vector<8x256xf32>
    %103 = vector.extract_strided_slice %102 {offsets = [0, 128], sizes = [8, 128], strides = [1, 1]} : vector<8x256xf32> to vector<8x128xf32>
    %104 = arith.addf %103, %3 : vector<8x128xf32>
    %105 = arith.negf %104 : vector<8x128xf32>
    %106 = math.exp %105 : vector<8x128xf32>
    %cst_18 = arith.constant 1.000000e+00 : f32
    %107 = vector.broadcast %cst_18 : f32 to vector<8x128xf32>
    %108 = arith.addf %107, %106 : vector<8x128xf32>
    %109 = arith.divf %107, %108 : vector<8x128xf32>
    %110 = vector.extract_strided_slice %104 {offsets = [0, 64], sizes = [8, 32], strides = [1, 1]} : vector<8x128xf32> to vector<8x32xf32>
    %111 = math.tanh %110 : vector<8x32xf32>
    %112 = vector.extract_strided_slice %109 {offsets = [0, 0], sizes = [8, 32], strides = [1, 1]} : vector<8x128xf32> to vector<8x32xf32>
    %113 = vector.extract_strided_slice %109 {offsets = [0, 32], sizes = [8, 32], strides = [1, 1]} : vector<8x128xf32> to vector<8x32xf32>
    %114 = vector.extract_strided_slice %109 {offsets = [0, 96], sizes = [8, 32], strides = [1, 1]} : vector<8x128xf32> to vector<8x32xf32>
    %115 = arith.mulf %113, %78 : vector<8x32xf32>
    %116 = arith.mulf %112, %111 : vector<8x32xf32>
    %117 = arith.addf %115, %116 : vector<8x32xf32>
    %118 = math.tanh %117 : vector<8x32xf32>
    %119 = arith.mulf %114, %118 : vector<8x32xf32>
    %c3 = arith.constant 3 : index
    %c0_19 = arith.constant 0 : index
    %c0_20 = arith.constant 0 : index
    %120 = vector.load %arg0[%c3, %c0_19, %c0_20] : memref<8x8x128xf32, #tpu.memory_space<vmem>>, vector<1x8x128xf32>
    %121 = vector.shape_cast %120 : vector<1x8x128xf32> to vector<8x128xf32>
    %122 = vector.extract_strided_slice %102 {offsets = [0, 0], sizes = [8, 128], strides = [1, 1]} : vector<8x256xf32> to vector<8x128xf32>
    %123 = arith.addf %121, %122 : vector<8x128xf32>
    %124 = arith.negf %123 : vector<8x128xf32>
    %125 = math.exp %124 : vector<8x128xf32>
    %cst_21 = arith.constant 1.000000e+00 : f32
    %126 = vector.broadcast %cst_21 : f32 to vector<8x128xf32>
    %127 = arith.addf %126, %125 : vector<8x128xf32>
    %128 = arith.divf %126, %127 : vector<8x128xf32>
    %129 = vector.extract_strided_slice %123 {offsets = [0, 64], sizes = [8, 32], strides = [1, 1]} : vector<8x128xf32> to vector<8x32xf32>
    %130 = math.tanh %129 : vector<8x32xf32>
    %131 = vector.extract_strided_slice %128 {offsets = [0, 0], sizes = [8, 32], strides = [1, 1]} : vector<8x128xf32> to vector<8x32xf32>
    %132 = vector.extract_strided_slice %128 {offsets = [0, 32], sizes = [8, 32], strides = [1, 1]} : vector<8x128xf32> to vector<8x32xf32>
    %133 = vector.extract_strided_slice %128 {offsets = [0, 96], sizes = [8, 32], strides = [1, 1]} : vector<8x128xf32> to vector<8x32xf32>
    %134 = arith.mulf %132, %97 : vector<8x32xf32>
    %135 = arith.mulf %131, %130 : vector<8x32xf32>
    %136 = arith.addf %134, %135 : vector<8x32xf32>
    %137 = math.tanh %136 : vector<8x32xf32>
    %138 = arith.mulf %133, %137 : vector<8x32xf32>
    %139 = tpu.concatenate %138, %119 in 1 : vector<8x32xf32>, vector<8x32xf32> -> vector<8x64xf32>
    %140 = arith.truncf %139 : vector<8x64xf32> to vector<8x64xbf16>
    %cst_22 = arith.constant dense<0.000000e+00> : vector<8x256xf32>
    %141 = tpu.matmul %140, %0, %cst_22 {dimension_numbers = #tpu.dot_dimension_numbers<[1], [0], [0], [1], [0, 0, 1, 1], [], []>} : vector<8x64xbf16>, vector<64x256xbf16>, vector<8x256xf32> -> vector<8x256xf32>
    %142 = vector.extract_strided_slice %141 {offsets = [0, 128], sizes = [8, 128], strides = [1, 1]} : vector<8x256xf32> to vector<8x128xf32>
    %143 = arith.addf %142, %3 : vector<8x128xf32>
    %144 = arith.negf %143 : vector<8x128xf32>
    %145 = math.exp %144 : vector<8x128xf32>
    %cst_23 = arith.constant 1.000000e+00 : f32
    %146 = vector.broadcast %cst_23 : f32 to vector<8x128xf32>
    %147 = arith.addf %146, %145 : vector<8x128xf32>
    %148 = arith.divf %146, %147 : vector<8x128xf32>
    %149 = vector.extract_strided_slice %143 {offsets = [0, 64], sizes = [8, 32], strides = [1, 1]} : vector<8x128xf32> to vector<8x32xf32>
    %150 = math.tanh %149 : vector<8x32xf32>
    %151 = vector.extract_strided_slice %148 {offsets = [0, 0], sizes = [8, 32], strides = [1, 1]} : vector<8x128xf32> to vector<8x32xf32>
    %152 = vector.extract_strided_slice %148 {offsets = [0, 32], sizes = [8, 32], strides = [1, 1]} : vector<8x128xf32> to vector<8x32xf32>
    %153 = vector.extract_strided_slice %148 {offsets = [0, 96], sizes = [8, 32], strides = [1, 1]} : vector<8x128xf32> to vector<8x32xf32>
    %154 = arith.mulf %152, %117 : vector<8x32xf32>
    %155 = arith.mulf %151, %150 : vector<8x32xf32>
    %156 = arith.addf %154, %155 : vector<8x32xf32>
    %157 = math.tanh %156 : vector<8x32xf32>
    %158 = arith.mulf %153, %157 : vector<8x32xf32>
    %c4 = arith.constant 4 : index
    %c0_24 = arith.constant 0 : index
    %c0_25 = arith.constant 0 : index
    %159 = vector.load %arg0[%c4, %c0_24, %c0_25] : memref<8x8x128xf32, #tpu.memory_space<vmem>>, vector<1x8x128xf32>
    %160 = vector.shape_cast %159 : vector<1x8x128xf32> to vector<8x128xf32>
    %161 = vector.extract_strided_slice %141 {offsets = [0, 0], sizes = [8, 128], strides = [1, 1]} : vector<8x256xf32> to vector<8x128xf32>
    %162 = arith.addf %160, %161 : vector<8x128xf32>
    %163 = arith.negf %162 : vector<8x128xf32>
    %164 = math.exp %163 : vector<8x128xf32>
    %cst_26 = arith.constant 1.000000e+00 : f32
    %165 = vector.broadcast %cst_26 : f32 to vector<8x128xf32>
    %166 = arith.addf %165, %164 : vector<8x128xf32>
    %167 = arith.divf %165, %166 : vector<8x128xf32>
    %168 = vector.extract_strided_slice %162 {offsets = [0, 64], sizes = [8, 32], strides = [1, 1]} : vector<8x128xf32> to vector<8x32xf32>
    %169 = math.tanh %168 : vector<8x32xf32>
    %170 = vector.extract_strided_slice %167 {offsets = [0, 0], sizes = [8, 32], strides = [1, 1]} : vector<8x128xf32> to vector<8x32xf32>
    %171 = vector.extract_strided_slice %167 {offsets = [0, 32], sizes = [8, 32], strides = [1, 1]} : vector<8x128xf32> to vector<8x32xf32>
    %172 = vector.extract_strided_slice %167 {offsets = [0, 96], sizes = [8, 32], strides = [1, 1]} : vector<8x128xf32> to vector<8x32xf32>
    %173 = arith.mulf %171, %136 : vector<8x32xf32>
    %174 = arith.mulf %170, %169 : vector<8x32xf32>
    %175 = arith.addf %173, %174 : vector<8x32xf32>
    %176 = math.tanh %175 : vector<8x32xf32>
    %177 = arith.mulf %172, %176 : vector<8x32xf32>
    %178 = tpu.concatenate %177, %158 in 1 : vector<8x32xf32>, vector<8x32xf32> -> vector<8x64xf32>
    %179 = arith.truncf %178 : vector<8x64xf32> to vector<8x64xbf16>
    %cst_27 = arith.constant dense<0.000000e+00> : vector<8x256xf32>
    %180 = tpu.matmul %179, %0, %cst_27 {dimension_numbers = #tpu.dot_dimension_numbers<[1], [0], [0], [1], [0, 0, 1, 1], [], []>} : vector<8x64xbf16>, vector<64x256xbf16>, vector<8x256xf32> -> vector<8x256xf32>
    %181 = vector.extract_strided_slice %180 {offsets = [0, 128], sizes = [8, 128], strides = [1, 1]} : vector<8x256xf32> to vector<8x128xf32>
    %182 = arith.addf %181, %3 : vector<8x128xf32>
    %183 = arith.negf %182 : vector<8x128xf32>
    %184 = math.exp %183 : vector<8x128xf32>
    %cst_28 = arith.constant 1.000000e+00 : f32
    %185 = vector.broadcast %cst_28 : f32 to vector<8x128xf32>
    %186 = arith.addf %185, %184 : vector<8x128xf32>
    %187 = arith.divf %185, %186 : vector<8x128xf32>
    %188 = vector.extract_strided_slice %182 {offsets = [0, 64], sizes = [8, 32], strides = [1, 1]} : vector<8x128xf32> to vector<8x32xf32>
    %189 = math.tanh %188 : vector<8x32xf32>
    %190 = vector.extract_strided_slice %187 {offsets = [0, 0], sizes = [8, 32], strides = [1, 1]} : vector<8x128xf32> to vector<8x32xf32>
    %191 = vector.extract_strided_slice %187 {offsets = [0, 32], sizes = [8, 32], strides = [1, 1]} : vector<8x128xf32> to vector<8x32xf32>
    %192 = vector.extract_strided_slice %187 {offsets = [0, 96], sizes = [8, 32], strides = [1, 1]} : vector<8x128xf32> to vector<8x32xf32>
    %193 = arith.mulf %191, %156 : vector<8x32xf32>
    %194 = arith.mulf %190, %189 : vector<8x32xf32>
    %195 = arith.addf %193, %194 : vector<8x32xf32>
    %196 = math.tanh %195 : vector<8x32xf32>
    %197 = arith.mulf %192, %196 : vector<8x32xf32>
    %c5 = arith.constant 5 : index
    %c0_29 = arith.constant 0 : index
    %c0_30 = arith.constant 0 : index
    %198 = vector.load %arg0[%c5, %c0_29, %c0_30] : memref<8x8x128xf32, #tpu.memory_space<vmem>>, vector<1x8x128xf32>
    %199 = vector.shape_cast %198 : vector<1x8x128xf32> to vector<8x128xf32>
    %200 = vector.extract_strided_slice %180 {offsets = [0, 0], sizes = [8, 128], strides = [1, 1]} : vector<8x256xf32> to vector<8x128xf32>
    %201 = arith.addf %199, %200 : vector<8x128xf32>
    %202 = arith.negf %201 : vector<8x128xf32>
    %203 = math.exp %202 : vector<8x128xf32>
    %cst_31 = arith.constant 1.000000e+00 : f32
    %204 = vector.broadcast %cst_31 : f32 to vector<8x128xf32>
    %205 = arith.addf %204, %203 : vector<8x128xf32>
    %206 = arith.divf %204, %205 : vector<8x128xf32>
    %207 = vector.extract_strided_slice %201 {offsets = [0, 64], sizes = [8, 32], strides = [1, 1]} : vector<8x128xf32> to vector<8x32xf32>
    %208 = math.tanh %207 : vector<8x32xf32>
    %209 = vector.extract_strided_slice %206 {offsets = [0, 0], sizes = [8, 32], strides = [1, 1]} : vector<8x128xf32> to vector<8x32xf32>
    %210 = vector.extract_strided_slice %206 {offsets = [0, 32], sizes = [8, 32], strides = [1, 1]} : vector<8x128xf32> to vector<8x32xf32>
    %211 = vector.extract_strided_slice %206 {offsets = [0, 96], sizes = [8, 32], strides = [1, 1]} : vector<8x128xf32> to vector<8x32xf32>
    %212 = arith.mulf %210, %175 : vector<8x32xf32>
    %213 = arith.mulf %209, %208 : vector<8x32xf32>
    %214 = arith.addf %212, %213 : vector<8x32xf32>
    %215 = math.tanh %214 : vector<8x32xf32>
    %216 = arith.mulf %211, %215 : vector<8x32xf32>
    %217 = tpu.concatenate %216, %197 in 1 : vector<8x32xf32>, vector<8x32xf32> -> vector<8x64xf32>
    %218 = arith.truncf %217 : vector<8x64xf32> to vector<8x64xbf16>
    %cst_32 = arith.constant dense<0.000000e+00> : vector<8x256xf32>
    %219 = tpu.matmul %218, %0, %cst_32 {dimension_numbers = #tpu.dot_dimension_numbers<[1], [0], [0], [1], [0, 0, 1, 1], [], []>} : vector<8x64xbf16>, vector<64x256xbf16>, vector<8x256xf32> -> vector<8x256xf32>
    %220 = vector.extract_strided_slice %219 {offsets = [0, 128], sizes = [8, 128], strides = [1, 1]} : vector<8x256xf32> to vector<8x128xf32>
    %221 = arith.addf %220, %3 : vector<8x128xf32>
    %222 = arith.negf %221 : vector<8x128xf32>
    %223 = math.exp %222 : vector<8x128xf32>
    %cst_33 = arith.constant 1.000000e+00 : f32
    %224 = vector.broadcast %cst_33 : f32 to vector<8x128xf32>
    %225 = arith.addf %224, %223 : vector<8x128xf32>
    %226 = arith.divf %224, %225 : vector<8x128xf32>
    %227 = vector.extract_strided_slice %221 {offsets = [0, 64], sizes = [8, 32], strides = [1, 1]} : vector<8x128xf32> to vector<8x32xf32>
    %228 = math.tanh %227 : vector<8x32xf32>
    %229 = vector.extract_strided_slice %226 {offsets = [0, 0], sizes = [8, 32], strides = [1, 1]} : vector<8x128xf32> to vector<8x32xf32>
    %230 = vector.extract_strided_slice %226 {offsets = [0, 32], sizes = [8, 32], strides = [1, 1]} : vector<8x128xf32> to vector<8x32xf32>
    %231 = vector.extract_strided_slice %226 {offsets = [0, 96], sizes = [8, 32], strides = [1, 1]} : vector<8x128xf32> to vector<8x32xf32>
    %232 = arith.mulf %230, %195 : vector<8x32xf32>
    %233 = arith.mulf %229, %228 : vector<8x32xf32>
    %234 = arith.addf %232, %233 : vector<8x32xf32>
    %235 = math.tanh %234 : vector<8x32xf32>
    %236 = arith.mulf %231, %235 : vector<8x32xf32>
    %c6 = arith.constant 6 : index
    %c0_34 = arith.constant 0 : index
    %c0_35 = arith.constant 0 : index
    %237 = vector.load %arg0[%c6, %c0_34, %c0_35] : memref<8x8x128xf32, #tpu.memory_space<vmem>>, vector<1x8x128xf32>
    %238 = vector.shape_cast %237 : vector<1x8x128xf32> to vector<8x128xf32>
    %239 = vector.extract_strided_slice %219 {offsets = [0, 0], sizes = [8, 128], strides = [1, 1]} : vector<8x256xf32> to vector<8x128xf32>
    %240 = arith.addf %238, %239 : vector<8x128xf32>
    %241 = arith.negf %240 : vector<8x128xf32>
    %242 = math.exp %241 : vector<8x128xf32>
    %cst_36 = arith.constant 1.000000e+00 : f32
    %243 = vector.broadcast %cst_36 : f32 to vector<8x128xf32>
    %244 = arith.addf %243, %242 : vector<8x128xf32>
    %245 = arith.divf %243, %244 : vector<8x128xf32>
    %246 = vector.extract_strided_slice %240 {offsets = [0, 64], sizes = [8, 32], strides = [1, 1]} : vector<8x128xf32> to vector<8x32xf32>
    %247 = math.tanh %246 : vector<8x32xf32>
    %248 = vector.extract_strided_slice %245 {offsets = [0, 0], sizes = [8, 32], strides = [1, 1]} : vector<8x128xf32> to vector<8x32xf32>
    %249 = vector.extract_strided_slice %245 {offsets = [0, 32], sizes = [8, 32], strides = [1, 1]} : vector<8x128xf32> to vector<8x32xf32>
    %250 = vector.extract_strided_slice %245 {offsets = [0, 96], sizes = [8, 32], strides = [1, 1]} : vector<8x128xf32> to vector<8x32xf32>
    %251 = arith.mulf %249, %214 : vector<8x32xf32>
    %252 = arith.mulf %248, %247 : vector<8x32xf32>
    %253 = arith.addf %251, %252 : vector<8x32xf32>
    %254 = math.tanh %253 : vector<8x32xf32>
    %255 = arith.mulf %250, %254 : vector<8x32xf32>
    %256 = tpu.concatenate %255, %236 in 1 : vector<8x32xf32>, vector<8x32xf32> -> vector<8x64xf32>
    %257 = arith.truncf %256 : vector<8x64xf32> to vector<8x64xbf16>
    %cst_37 = arith.constant dense<0.000000e+00> : vector<8x256xf32>
    %258 = tpu.matmul %257, %0, %cst_37 {dimension_numbers = #tpu.dot_dimension_numbers<[1], [0], [0], [1], [0, 0, 1, 1], [], []>} : vector<8x64xbf16>, vector<64x256xbf16>, vector<8x256xf32> -> vector<8x256xf32>
    %259 = vector.extract_strided_slice %258 {offsets = [0, 128], sizes = [8, 128], strides = [1, 1]} : vector<8x256xf32> to vector<8x128xf32>
    %260 = arith.addf %259, %3 : vector<8x128xf32>
    %261 = arith.negf %260 : vector<8x128xf32>
    %262 = math.exp %261 : vector<8x128xf32>
    %cst_38 = arith.constant 1.000000e+00 : f32
    %263 = vector.broadcast %cst_38 : f32 to vector<8x128xf32>
    %264 = arith.addf %263, %262 : vector<8x128xf32>
    %265 = arith.divf %263, %264 : vector<8x128xf32>
    %266 = vector.extract_strided_slice %260 {offsets = [0, 64], sizes = [8, 32], strides = [1, 1]} : vector<8x128xf32> to vector<8x32xf32>
    %267 = math.tanh %266 : vector<8x32xf32>
    %268 = vector.extract_strided_slice %265 {offsets = [0, 0], sizes = [8, 32], strides = [1, 1]} : vector<8x128xf32> to vector<8x32xf32>
    %269 = vector.extract_strided_slice %265 {offsets = [0, 32], sizes = [8, 32], strides = [1, 1]} : vector<8x128xf32> to vector<8x32xf32>
    %270 = vector.extract_strided_slice %265 {offsets = [0, 96], sizes = [8, 32], strides = [1, 1]} : vector<8x128xf32> to vector<8x32xf32>
    %271 = arith.mulf %269, %234 : vector<8x32xf32>
    %272 = arith.mulf %268, %267 : vector<8x32xf32>
    %273 = arith.addf %271, %272 : vector<8x32xf32>
    %274 = math.tanh %273 : vector<8x32xf32>
    %275 = arith.mulf %270, %274 : vector<8x32xf32>
    %c7 = arith.constant 7 : index
    %c0_39 = arith.constant 0 : index
    %c0_40 = arith.constant 0 : index
    %276 = vector.load %arg0[%c7, %c0_39, %c0_40] : memref<8x8x128xf32, #tpu.memory_space<vmem>>, vector<1x8x128xf32>
    %277 = vector.shape_cast %276 : vector<1x8x128xf32> to vector<8x128xf32>
    %278 = vector.extract_strided_slice %258 {offsets = [0, 0], sizes = [8, 128], strides = [1, 1]} : vector<8x256xf32> to vector<8x128xf32>
    %279 = arith.addf %277, %278 : vector<8x128xf32>
    %280 = arith.negf %279 : vector<8x128xf32>
    %281 = math.exp %280 : vector<8x128xf32>
    %cst_41 = arith.constant 1.000000e+00 : f32
    %282 = vector.broadcast %cst_41 : f32 to vector<8x128xf32>
    %283 = arith.addf %282, %281 : vector<8x128xf32>
    %284 = arith.divf %282, %283 : vector<8x128xf32>
    %285 = vector.extract_strided_slice %279 {offsets = [0, 64], sizes = [8, 32], strides = [1, 1]} : vector<8x128xf32> to vector<8x32xf32>
    %286 = math.tanh %285 : vector<8x32xf32>
    %287 = vector.extract_strided_slice %284 {offsets = [0, 0], sizes = [8, 32], strides = [1, 1]} : vector<8x128xf32> to vector<8x32xf32>
    %288 = vector.extract_strided_slice %284 {offsets = [0, 32], sizes = [8, 32], strides = [1, 1]} : vector<8x128xf32> to vector<8x32xf32>
    %289 = vector.extract_strided_slice %284 {offsets = [0, 96], sizes = [8, 32], strides = [1, 1]} : vector<8x128xf32> to vector<8x32xf32>
    %290 = arith.mulf %288, %253 : vector<8x32xf32>
    %291 = arith.mulf %287, %286 : vector<8x32xf32>
    %292 = arith.addf %290, %291 : vector<8x32xf32>
    %293 = math.tanh %292 : vector<8x32xf32>
    %294 = arith.mulf %289, %293 : vector<8x32xf32>
    %295 = tpu.concatenate %294, %275 in 1 : vector<8x32xf32>, vector<8x32xf32> -> vector<8x64xf32>
    %296 = arith.truncf %295 : vector<8x64xf32> to vector<8x64xbf16>
    %cst_42 = arith.constant dense<0.000000e+00> : vector<8x256xf32>
    %297 = tpu.matmul %296, %0, %cst_42 {dimension_numbers = #tpu.dot_dimension_numbers<[1], [0], [0], [1], [0, 0, 1, 1], [], []>} : vector<8x64xbf16>, vector<64x256xbf16>, vector<8x256xf32> -> vector<8x256xf32>
    %298 = vector.extract_strided_slice %297 {offsets = [0, 128], sizes = [8, 128], strides = [1, 1]} : vector<8x256xf32> to vector<8x128xf32>
    %299 = arith.addf %298, %3 : vector<8x128xf32>
    %300 = arith.negf %299 : vector<8x128xf32>
    %301 = math.exp %300 : vector<8x128xf32>
    %cst_43 = arith.constant 1.000000e+00 : f32
    %302 = vector.broadcast %cst_43 : f32 to vector<8x128xf32>
    %303 = arith.addf %302, %301 : vector<8x128xf32>
    %304 = arith.divf %302, %303 : vector<8x128xf32>
    %305 = vector.extract_strided_slice %299 {offsets = [0, 64], sizes = [8, 32], strides = [1, 1]} : vector<8x128xf32> to vector<8x32xf32>
    %306 = math.tanh %305 : vector<8x32xf32>
    %307 = vector.extract_strided_slice %304 {offsets = [0, 0], sizes = [8, 32], strides = [1, 1]} : vector<8x128xf32> to vector<8x32xf32>
    %308 = vector.extract_strided_slice %304 {offsets = [0, 32], sizes = [8, 32], strides = [1, 1]} : vector<8x128xf32> to vector<8x32xf32>
    %309 = vector.extract_strided_slice %304 {offsets = [0, 96], sizes = [8, 32], strides = [1, 1]} : vector<8x128xf32> to vector<8x32xf32>
    %310 = arith.mulf %308, %273 : vector<8x32xf32>
    %311 = arith.mulf %307, %306 : vector<8x32xf32>
    %312 = arith.addf %310, %311 : vector<8x32xf32>
    %313 = math.tanh %312 : vector<8x32xf32>
    %314 = arith.mulf %309, %313 : vector<8x32xf32>
    %315 = arith.truncf %314 : vector<8x32xf32> to vector<8x32xbf16>
    %c0_44 = arith.constant 0 : index
    %c0_45 = arith.constant 0 : index
    %316 = vector.load %arg3[%c0_44, %c0_45] : memref<32x128xbf16, #tpu.memory_space<vmem>>, vector<32x128xbf16>
    %cst_46 = arith.constant dense<0.000000e+00> : vector<8x128xf32>
    %317 = tpu.matmul %315, %316, %cst_46 {dimension_numbers = #tpu.dot_dimension_numbers<[1], [0], [0], [1], [0, 0, 1, 1], [], []>} : vector<8x32xbf16>, vector<32x128xbf16>, vector<8x128xf32> -> vector<8x128xf32>
    %c0_47 = arith.constant 0 : index
    %c0_48 = arith.constant 0 : index
    %318 = vector.load %arg4[%c0_47, %c0_48] : memref<1x128xf32, #tpu.memory_space<vmem>>, vector<1x128xf32>
    %319 = vector.broadcast %318 : vector<1x128xf32> to vector<8x128xf32>
    %320 = arith.addf %317, %319 : vector<8x128xf32>
    %c0_49 = arith.constant 0 : index
    %c0_50 = arith.constant 0 : index
    %321 = vector.load %arg5[%c0_49, %c0_50] : memref<8x128xf32, #tpu.memory_space<vmem>>, vector<8x128xf32>
    tpu.vector_store %arg5[%c0_49, %c0_50], %320 {strides = array<i32>} : memref<8x128xf32, #tpu.memory_space<vmem>>, vector<8x128xf32>,
    return
  }
}

</mosaic_0001>

<llo_original>
// kernel: stacked_lstm_forward.1
$region0: #{stacked_lstm_forward.1}
  #allocation0 [shape = 'u32[]', space=smem, size = 0x4, offset = 0x4, fixed_abs, tag = 'smem constant byte address 0x4 - core index']
  #allocation1 [shape = 'u32[72,128]{1,0:T(1,128)}', space=vmem, size = 0x9000, scoped, tag = 'internal scratch']
  %s0 = inlined_call_operand.vmem [shape: f32[8,8,128], index: 0, kind: input, shape index: {}]
  %s1 = inlined_call_operand.vmem [shape: bf16[64,256], index: 1, kind: input, shape index: {}]
  %s2 = inlined_call_operand.vmem [shape: f32[1,128], index: 2, kind: input, shape index: {}]
  %s3 = inlined_call_operand.vmem [shape: bf16[32,128], index: 3, kind: input, shape index: {}]
  %s4 = inlined_call_operand.vmem [shape: f32[1,128], index: 4, kind: input, shape index: {}]
  %s5 = inlined_call_operand.vmem [shape: f32[8,128], index: 5, kind: output, shape index: {}]
  %s6 = sld [smem:[#allocation0]]
  $region30: #{stacked_lstm_forward.1} parent=0
    _
  %s8 = ssub.s32 1, %s6
  %s9 = scalar_select 0, %s8, %s6
  // Predicated region
  $region2: #{stacked_lstm_forward.1} parent=0 // pred_check
    _
  $region3: #{stacked_lstm_forward.1} parent=0 // pred_check_branch
    %11 = sbr.rel (0) target = $region5
  $region4: #{stacked_lstm_forward.1} parent=0 // pred_region
    _
  $region5: #{stacked_lstm_forward.1} parent=0 // pred_fallthru
    _
  // Predicated region
  $region6: #{stacked_lstm_forward.1} parent=0 // pred_check
    _
  $region7: #{stacked_lstm_forward.1} parent=0 // pred_check_branch
    %13 = sbr.rel (0) target = $region9
  $region8: #{stacked_lstm_forward.1} parent=0 // pred_region
    _
  $region9: #{stacked_lstm_forward.1} parent=0 // pred_fallthru
    _
  // Predicated region
  $region10: #{stacked_lstm_forward.1} parent=0 // pred_check
    _
  $region11: #{stacked_lstm_forward.1} parent=0 // pred_check_branch
    %15 = sbr.rel (0) target = $region13
  $region12: #{stacked_lstm_forward.1} parent=0 // pred_region
    _
  $region13: #{stacked_lstm_forward.1} parent=0 // pred_fallthru
    _
  // Predicated region
  $region14: #{stacked_lstm_forward.1} parent=0 // pred_check
    _
  $region15: #{stacked_lstm_forward.1} parent=0 // pred_check_branch
    %17 = sbr.rel (0) target = $region17
  $region16: #{stacked_lstm_forward.1} parent=0 // pred_region
    _
  $region17: #{stacked_lstm_forward.1} parent=0 // pred_fallthru
    _
  // Predicated region
  $region18: #{stacked_lstm_forward.1} parent=0 // pred_check
    _
  $region19: #{stacked_lstm_forward.1} parent=0 // pred_check_branch
    %19 = sbr.rel (0) target = $region21
  $region20: #{stacked_lstm_forward.1} parent=0 // pred_region
    _
  $region21: #{stacked_lstm_forward.1} parent=0 // pred_fallthru
    _
  %v21 = vld [vmem:[%s1] sm:$0xff]
  %v22 = vld [vmem:[%s1 + $0x8] sm:$0xff]
  %v23 = vld [vmem:[%s1 + $0x10] sm:$0xff]
  %v24 = vld [vmem:[%s1 + $0x18] sm:$0xff]
  %v25 = vld [vmem:[%s1 + $0x20] sm:$0xff]
  %v26 = vld [vmem:[%s1 + $0x28] sm:$0xff]
  %v27 = vld [vmem:[%s1 + $0x30] sm:$0xff]
  %v28 = vld [vmem:[%s1 + $0x38] sm:$0xff]
  %v29 = vld [vmem:[%s2] sm:$0x1]
  %v31 = vperm.slane %v29, 0
  %v33 = vld [vmem:[%s0] sm:$0xff]
  %v34 = vxor.u32 %v33, 2147483648
  %v35 = vmul.f32 %v34, 1.442695
  %v36 = vpow.pop %v35
  %v37 = vadd.f32 %v36, 1.0
  %v38 = vrcp.pop %v37
  %v39 = vmul.f32 %v37, %v38
  %v40 = vsub.f32 1.0, %v39
  %v41 = vmul.f32 %v38, %v40
  %v42 = vadd.f32 %v38, %v41
  %vm43 = vweird.f32 %v37
  %vm44 = vweird.f32 %v38
  %vm45 = vmor %vm43, %vm44
  %v46 = vsel %vm45, %v38, %v42
  %v47 = vand.u32 2147483647, %v37
  %vm48 = vcmp.eq.f32.partialorder %v47, 8.507059e+37
  %v49 = vand.u32 %v37, 2147483648
  %v50 = vor.u32 1.1754944e-38, %v49
  %v51 = vsel %vm48, %v50, %v46
  %v52 = vmul.f32 1.0, %v51
  %v53 = vtanh.pop %v33
  %v54 = vmul.f32 %v52, 0.0
  %56 = vrot.lane.b32.xlu0 %v53, 64
  %v57 = vpop.permute.xlu0 %56
  %v59 = vmul.f32 %v52, %v57
  %61 = vrot.lane.b32.xlu0 %v59, 32
  %v62 = vpop.permute.xlu0 %61
  %v64 = vadd.f32 %v54, %v62
  %v65 = vtanh.pop %v64
  %67 = vrot.lane.b32.xlu0 %v65, 64
  %v68 = vpop.permute.xlu0 %67
  %v70 = vmul.f32 %v52, %v68
  %72 = vrot.lane.b32.xlu0 %v70, 32
  %v73 = vpop.permute.xlu0 %72
  %vm75 = vcmask 261120
  %v76 = vsel %vm75, %v73, 0.0
  %v77 = vpack.c.bf16 %v76, %v76
  %v86 = vunpack.c.l.b16 %v21
  %v87 = vunpack.c.h.b16 %v21
  %v88 = vunpack.c.l.b16 %v22
  %v89 = vunpack.c.h.b16 %v22
  %v90 = vunpack.c.l.b16 %v23
  %v91 = vunpack.c.h.b16 %v23
  %v92 = vunpack.c.l.b16 %v24
  %v93 = vunpack.c.h.b16 %v24
  %v94 = vunpack.c.l.b16 %v25
  %v95 = vunpack.c.h.b16 %v25
  %v96 = vunpack.c.l.b16 %v26
  %v97 = vunpack.c.h.b16 %v26
  %v98 = vunpack.c.l.b16 %v27
  %v99 = vunpack.c.h.b16 %v27
  %v100 = vunpack.c.l.b16 %v28
  %v101 = vunpack.c.h.b16 %v28
  %v102 = vpack.c.b16 %v88, %v86
  %v103 = vpack.c.b16 %v89, %v87
  %v104 = vpack.c.b16 %v92, %v90
  %v105 = vpack.c.b16 %v93, %v91
  %v106 = vpack.c.b16 %v96, %v94
  %v107 = vpack.c.b16 %v97, %v95
  %v108 = vpack.c.b16 %v100, %v98
  %v109 = vpack.c.b16 %v101, %v99
  %vm118 = vcmask 523264
  %v120 = vsel %vm118, %v77, 0
  %122 = vmatpush.bf16.msra.mxu0 0
  %123 = vmatpush.bf16.msra.mxu0 0
  %124 = vmatpush.bf16.msra.mxu0 0
  %125 = vmatpush.bf16.msra.mxu0 0
  %126 = vmatpush.bf16.msra.mxu0 %v108
  %127 = vmatpush.bf16.msra.mxu0 %v106
  %128 = vmatpush.bf16.msra.mxu0 %v104
  %129 = vmatpush.bf16.msra.mxu0 %v102
  %130 = vmatmul.bf16.gmra.mxu0 %v120
  %v131 = vpop.f32.mrf.mxu0
  %v132 = vadd.f32 0.0, %v131
  %v133 = vpop.f32.mrf.mxu0
  %134 = vdwg.mxu0
  %135 = vmatpush.bf16.msra.mxu0 0
  %136 = vmatpush.bf16.msra.mxu0 0
  %137 = vmatpush.bf16.msra.mxu0 0
  %138 = vmatpush.bf16.msra.mxu0 0
  %139 = vmatpush.bf16.msra.mxu0 %v109
  %140 = vmatpush.bf16.msra.mxu0 %v107
  %141 = vmatpush.bf16.msra.mxu0 %v105
  %142 = vmatpush.bf16.msra.mxu0 %v103
  %143 = vmatmul.bf16.gmra.mxu0 %v120
  %v144 = vpop.f32.mrf.mxu0
  %v145 = vadd.f32 0.0, %v144
  %v146 = vpop.f32.mrf.mxu0
  %147 = vdwg.mxu0
  %v148 = vadd.f32 %v145, %v31
  %v149 = vxor.u32 %v148, 2147483648
  %v150 = vmul.f32 %v149, 1.442695
  %v151 = vpow.pop %v150
  %v152 = vadd.f32 %v151, 1.0
  %v153 = vrcp.pop %v152
  %v154 = vmul.f32 %v152, %v153
  %v155 = vsub.f32 1.0, %v154
  %v156 = vmul.f32 %v153, %v155
  %v157 = vadd.f32 %v153, %v156
  %vm158 = vweird.f32 %v152
  %vm159 = vweird.f32 %v153
  %vm160 = vmor %vm158, %vm159
  %v161 = vsel %vm160, %v153, %v157
  %v162 = vand.u32 2147483647, %v152
  %vm163 = vcmp.eq.f32.partialorder %v162, 8.507059e+37
  %v164 = vand.u32 %v152, 2147483648
  %v165 = vor.u32 1.1754944e-38, %v164
  %v166 = vsel %vm163, %v165, %v161
  %v167 = vmul.f32 1.0, %v166
  %v168 = vtanh.pop %v148
  %v169 = vmul.f32 %v167, 0.0
  %171 = vrot.lane.b32.xlu0 %v168, 64
  %v172 = vpop.permute.xlu0 %171
  %v174 = vmul.f32 %v167, %v172
  %176 = vrot.lane.b32.xlu0 %v174, 32
  %v177 = vpop.permute.xlu0 %176
  %v179 = vadd.f32 %v169, %v177
  %v180 = vtanh.pop %v179
  %182 = vrot.lane.b32.xlu0 %v180, 64
  %v183 = vpop.permute.xlu0 %182
  %v185 = vmul.f32 %v167, %v183
  %s186 = scalar_lea.vmem %s0, 8
  %v187 = vld [vmem:[%s186] sm:$0xff]
  %v188 = vadd.f32 %v187, %v132
  %v189 = vxor.u32 %v188, 2147483648
  %v190 = vmul.f32 %v189, 1.442695
  %v191 = vpow.pop %v190
  %v192 = vadd.f32 %v191, 1.0
  %v193 = vrcp.pop %v192
  %v194 = vmul.f32 %v192, %v193
  %v195 = vsub.f32 1.0, %v194
  %v196 = vmul.f32 %v193, %v195
  %v197 = vadd.f32 %v193, %v196
  %vm198 = vweird.f32 %v192
  %vm199 = vweird.f32 %v193
  %vm200 = vmor %vm198, %vm199
  %v201 = vsel %vm200, %v193, %v197
  %v202 = vand.u32 2147483647, %v192
  %vm203 = vcmp.eq.f32.partialorder %v202, 8.507059e+37
  %v204 = vand.u32 %v192, 2147483648
  %v205 = vor.u32 1.1754944e-38, %v204
  %v206 = vsel %vm203, %v205, %v201
  %v207 = vmul.f32 1.0, %v206
  %v208 = vtanh.pop %v188
  %v209 = vmul.f32 %v207, %v64
  %211 = vrot.lane.b32.xlu0 %v208, 64
  %v212 = vpop.permute.xlu0 %211
  %v214 = vmul.f32 %v207, %v212
  %216 = vrot.lane.b32.xlu0 %v214, 32
  %v217 = vpop.permute.xlu0 %216
  %v219 = vadd.f32 %v209, %v217
  %v220 = vtanh.pop %v219
  %222 = vrot.lane.b32.xlu0 %v220, 64
  %v223 = vpop.permute.xlu0 %222
  %v225 = vmul.f32 %v207, %v223
  %227 = vrot.lane.b32.xlu0 %v225, 32
  %v228 = vpop.permute.xlu0 %227
  %231 = vrot.lane.b32.xlu0 %v185, 64
  %v232 = vpop.permute.xlu0 %231
  %v234 = vsel %vm75, %v228, %v232
  %v235 = vpack.c.bf16 %v234, %v234
  %v237 = vsel %vm118, %v235, 0
  %239 = vmatpush.bf16.msra.mxu0 0
  %240 = vmatpush.bf16.msra.mxu0 0
  %241 = vmatpush.bf16.msra.mxu0 0
  %242 = vmatpush.bf16.msra.mxu0 0
  %243 = vmatpush.bf16.msra.mxu0 %v108
  %244 = vmatpush.bf16.msra.mxu0 %v106
  %245 = vmatpush.bf16.msra.mxu0 %v104
  %246 = vmatpush.bf16.msra.mxu0 %v102
  %247 = vmatmul.bf16.gmra.mxu0 %v237
  %v248 = vpop.f32.mrf.mxu0
  %v249 = vadd.f32 0.0, %v248
  %v250 = vpop.f32.mrf.mxu0
  %251 = vdwg.mxu0
  %252 = vmatpush.bf16.msra.mxu0 0
  %253 = vmatpush.bf16.msra.mxu0 0
  %254 = vmatpush.bf16.msra.mxu0 0
  %255 = vmatpush.bf16.msra.mxu0 0
  %256 = vmatpush.bf16.msra.mxu0 %v109
  %257 = vmatpush.bf16.msra.mxu0 %v107
  %258 = vmatpush.bf16.msra.mxu0 %v105
  %259 = vmatpush.bf16.msra.mxu0 %v103
  %260 = vmatmul.bf16.gmra.mxu0 %v237
  %v261 = vpop.f32.mrf.mxu0
  %v262 = vadd.f32 0.0, %v261
  %v263 = vpop.f32.mrf.mxu0
  %264 = vdwg.mxu0
  %v265 = vadd.f32 %v262, %v31
  %v266 = vxor.u32 %v265, 2147483648
  %v267 = vmul.f32 %v266, 1.442695
  %v268 = vpow.pop %v267
  %v269 = vadd.f32 %v268, 1.0
  %v270 = vrcp.pop %v269
  %v271 = vmul.f32 %v269, %v270
  %v272 = vsub.f32 1.0, %v271
  %v273 = vmul.f32 %v270, %v272
  %v274 = vadd.f32 %v270, %v273
  %vm275 = vweird.f32 %v269
  %vm276 = vweird.f32 %v270
  %vm277 = vmor %vm275, %vm276
  %v278 = vsel %vm277, %v270, %v274
  %v279 = vand.u32 2147483647, %v269
  %vm280 = vcmp.eq.f32.partialorder %v279, 8.507059e+37
  %v281 = vand.u32 %v269, 2147483648
  %v282 = vor.u32 1.1754944e-38, %v281
  %v283 = vsel %vm280, %v282, %v278
  %v284 = vmul.f32 1.0, %v283
  %v285 = vtanh.pop %v265
  %v286 = vmul.f32 %v284, %v179
  %288 = vrot.lane.b32.xlu0 %v285, 64
  %v289 = vpop.permute.xlu0 %288
  %v291 = vmul.f32 %v284, %v289
  %293 = vrot.lane.b32.xlu0 %v291, 32
  %v294 = vpop.permute.xlu0 %293
  %v296 = vadd.f32 %v286, %v294
  %v297 = vtanh.pop %v296
  %299 = vrot.lane.b32.xlu0 %v297, 64
  %v300 = vpop.permute.xlu0 %299
  %v302 = vmul.f32 %v284, %v300
  %s303 = scalar_lea.vmem %s0, 16
  %v304 = vld [vmem:[%s303] sm:$0xff]
  %v305 = vadd.f32 %v304, %v249
  %v306 = vxor.u32 %v305, 2147483648
  %v307 = vmul.f32 %v306, 1.442695
  %v308 = vpow.pop %v307
  %v309 = vadd.f32 %v308, 1.0
  %v310 = vrcp.pop %v309
  %v311 = vmul.f32 %v309, %v310
  %v312 = vsub.f32 1.0, %v311
  %v313 = vmul.f32 %v310, %v312
  %v314 = vadd.f32 %v310, %v313
  %vm315 = vweird.f32 %v309
  %vm316 = vweird.f32 %v310
  %vm317 = vmor %vm315, %vm316
  %v318 = vsel %vm317, %v310, %v314
  %v319 = vand.u32 2147483647, %v309
  %vm320 = vcmp.eq.f32.partialorder %v319, 8.507059e+37
  %v321 = vand.u32 %v309, 2147483648
  %v322 = vor.u32 1.1754944e-38, %v321
  %v323 = vsel %vm320, %v322, %v318
  %v324 = vmul.f32 1.0, %v323
  %v325 = vtanh.pop %v305
  %v326 = vmul.f32 %v324, %v219
  %328 = vrot.lane.b32.xlu0 %v325, 64
  %v329 = vpop.permute.xlu0 %328
  %v331 = vmul.f32 %v324, %v329
  %333 = vrot.lane.b32.xlu0 %v331, 32
  %v334 = vpop.permute.xlu0 %333
  %v336 = vadd.f32 %v326, %v334
  %v337 = vtanh.pop %v336
  %339 = vrot.lane.b32.xlu0 %v337, 64
  %v340 = vpop.permute.xlu0 %339
  %v342 = vmul.f32 %v324, %v340
  %344 = vrot.lane.b32.xlu0 %v342, 32
  %v345 = vpop.permute.xlu0 %344
  %348 = vrot.lane.b32.xlu0 %v302, 64
  %v349 = vpop.permute.xlu0 %348
  %v351 = vsel %vm75, %v345, %v349
  %v352 = vpack.c.bf16 %v351, %v351
  %v354 = vsel %vm118, %v352, 0
  %356 = vmatpush.bf16.msra.mxu0 0
  %357 = vmatpush.bf16.msra.mxu0 0
  %358 = vmatpush.bf16.msra.mxu0 0
  %359 = vmatpush.bf16.msra.mxu0 0
  %360 = vmatpush.bf16.msra.mxu0 %v108
  %361 = vmatpush.bf16.msra.mxu0 %v106
  %362 = vmatpush.bf16.msra.mxu0 %v104
  %363 = vmatpush.bf16.msra.mxu0 %v102
  %364 = vmatmul.bf16.gmra.mxu0 %v354
  %v365 = vpop.f32.mrf.mxu0
  %v366 = vadd.f32 0.0, %v365
  %v367 = vpop.f32.mrf.mxu0
  %368 = vdwg.mxu0
  %369 = vmatpush.bf16.msra.mxu0 0
  %370 = vmatpush.bf16.msra.mxu0 0
  %371 = vmatpush.bf16.msra.mxu0 0
  %372 = vmatpush.bf16.msra.mxu0 0
  %373 = vmatpush.bf16.msra.mxu0 %v109
  %374 = vmatpush.bf16.msra.mxu0 %v107
  %375 = vmatpush.bf16.msra.mxu0 %v105
  %376 = vmatpush.bf16.msra.mxu0 %v103
  %377 = vmatmul.bf16.gmra.mxu0 %v354
  %v378 = vpop.f32.mrf.mxu0
  %v379 = vadd.f32 0.0, %v378
  %v380 = vpop.f32.mrf.mxu0
  %381 = vdwg.mxu0
  %v382 = vadd.f32 %v379, %v31
  %v383 = vxor.u32 %v382, 2147483648
  %v384 = vmul.f32 %v383, 1.442695
  %v385 = vpow.pop %v384
  %v386 = vadd.f32 %v385, 1.0
  %v387 = vrcp.pop %v386
  %v388 = vmul.f32 %v386, %v387
  %v389 = vsub.f32 1.0, %v388
  %v390 = vmul.f32 %v387, %v389
  %v391 = vadd.f32 %v387, %v390
  %vm392 = vweird.f32 %v386
  %vm393 = vweird.f32 %v387
  %vm394 = vmor %vm392, %vm393
  %v395 = vsel %vm394, %v387, %v391
  %v396 = vand.u32 2147483647, %v386
  %vm397 = vcmp.eq.f32.partialorder %v396, 8.507059e+37
  %v398 = vand.u32 %v386, 2147483648
  %v399 = vor.u32 1.1754944e-38, %v398
  %v400 = vsel %vm397, %v399, %v395
  %v401 = vmul.f32 1.0, %v400
  %v402 = vtanh.pop %v382
  %v403 = vmul.f32 %v401, %v296
  %405 = vrot.lane.b32.xlu0 %v402, 64
  %v406 = vpop.permute.xlu0 %405
  %v408 = vmul.f32 %v401, %v406
  %410 = vrot.lane.b32.xlu0 %v408, 32
  %v411 = vpop.permute.xlu0 %410
  %v413 = vadd.f32 %v403, %v411
  %v414 = vtanh.pop %v413
  %416 = vrot.lane.b32.xlu0 %v414, 64
  %v417 = vpop.permute.xlu0 %416
  %v419 = vmul.f32 %v401, %v417
  %s420 = scalar_lea.vmem %s0, 24
  %v421 = vld [vmem:[%s420] sm:$0xff]
  %v422 = vadd.f32 %v421, %v366
  %v423 = vxor.u32 %v422, 2147483648
  %v424 = vmul.f32 %v423, 1.442695
  %v425 = vpow.pop %v424
  %v426 = vadd.f32 %v425, 1.0
  %v427 = vrcp.pop %v426
  %v428 = vmul.f32 %v426, %v427
  %v429 = vsub.f32 1.0, %v428
  %v430 = vmul.f32 %v427, %v429
  %v431 = vadd.f32 %v427, %v430
  %vm432 = vweird.f32 %v426
  %vm433 = vweird.f32 %v427
  %vm434 = vmor %vm432, %vm433
  %v435 = vsel %vm434, %v427, %v431
  %v436 = vand.u32 2147483647, %v426
  %vm437 = vcmp.eq.f32.partialorder %v436, 8.507059e+37
  %v438 = vand.u32 %v426, 2147483648
  %v439 = vor.u32 1.1754944e-38, %v438
  %v440 = vsel %vm437, %v439, %v435
  %v441 = vmul.f32 1.0, %v440
  %v442 = vtanh.pop %v422
  %v443 = vmul.f32 %v441, %v336
  %445 = vrot.lane.b32.xlu0 %v442, 64
  %v446 = vpop.permute.xlu0 %445
  %v448 = vmul.f32 %v441, %v446
  %450 = vrot.lane.b32.xlu0 %v448, 32
  %v451 = vpop.permute.xlu0 %450
  %v453 = vadd.f32 %v443, %v451
  %v454 = vtanh.pop %v453
  %456 = vrot.lane.b32.xlu0 %v454, 64
  %v457 = vpop.permute.xlu0 %456
  %v459 = vmul.f32 %v441, %v457
  %461 = vrot.lane.b32.xlu0 %v459, 32
  %v462 = vpop.permute.xlu0 %461
  %465 = vrot.lane.b32.xlu0 %v419, 64
  %v466 = vpop.permute.xlu0 %465
  %v468 = vsel %vm75, %v462, %v466
  %v469 = vpack.c.bf16 %v468, %v468
  %v471 = vsel %vm118, %v469, 0
  %473 = vmatpush.bf16.msra.mxu0 0
  %474 = vmatpush.bf16.msra.mxu0 0
  %475 = vmatpush.bf16.msra.mxu0 0
  %476 = vmatpush.bf16.msra.mxu0 0
  %477 = vmatpush.bf16.msra.mxu0 %v108
  %478 = vmatpush.bf16.msra.mxu0 %v106
  %479 = vmatpush.bf16.msra.mxu0 %v104
  %480 = vmatpush.bf16.msra.mxu0 %v102
  %481 = vmatmul.bf16.gmra.mxu0 %v471
  %v482 = vpop.f32.mrf.mxu0
  %v483 = vadd.f32 0.0, %v482
  %v484 = vpop.f32.mrf.mxu0
  %485 = vdwg.mxu0
  %486 = vmatpush.bf16.msra.mxu0 0
  %487 = vmatpush.bf16.msra.mxu0 0
  %488 = vmatpush.bf16.msra.mxu0 0
  %489 = vmatpush.bf16.msra.mxu0 0
  %490 = vmatpush.bf16.msra.mxu0 %v109
  %491 = vmatpush.bf16.msra.mxu0 %v107
  %492 = vmatpush.bf16.msra.mxu0 %v105
  %493 = vmatpush.bf16.msra.mxu0 %v103
  %494 = vmatmul.bf16.gmra.mxu0 %v471
  %v495 = vpop.f32.mrf.mxu0
  %v496 = vadd.f32 0.0, %v495
  %v497 = vpop.f32.mrf.mxu0
  %498 = vdwg.mxu0
  %v499 = vadd.f32 %v496, %v31
  %v500 = vxor.u32 %v499, 2147483648
  %v501 = vmul.f32 %v500, 1.442695
  %v502 = vpow.pop %v501
  %v503 = vadd.f32 %v502, 1.0
  %v504 = vrcp.pop %v503
  %v505 = vmul.f32 %v503, %v504
  %v506 = vsub.f32 1.0, %v505
  %v507 = vmul.f32 %v504, %v506
  %v508 = vadd.f32 %v504, %v507
  %vm509 = vweird.f32 %v503
  %vm510 = vweird.f32 %v504
  %vm511 = vmor %vm509, %vm510
  %v512 = vsel %vm511, %v504, %v508
  %v513 = vand.u32 2147483647, %v503
  %vm514 = vcmp.eq.f32.partialorder %v513, 8.507059e+37
  %v515 = vand.u32 %v503, 2147483648
  %v516 = vor.u32 1.1754944e-38, %v515
  %v517 = vsel %vm514, %v516, %v512
  %v518 = vmul.f32 1.0, %v517
  %v519 = vtanh.pop %v499
  %v520 = vmul.f32 %v518, %v413
  %522 = vrot.lane.b32.xlu0 %v519, 64
  %v523 = vpop.permute.xlu0 %522
  %v525 = vmul.f32 %v518, %v523
  %527 = vrot.lane.b32.xlu0 %v525, 32
  %v528 = vpop.permute.xlu0 %527
  %v530 = vadd.f32 %v520, %v528
  %v531 = vtanh.pop %v530
  %533 = vrot.lane.b32.xlu0 %v531, 64
  %v534 = vpop.permute.xlu0 %533
  %v536 = vmul.f32 %v518, %v534
  %s537 = scalar_lea.vmem %s0, 32
  %v538 = vld [vmem:[%s537] sm:$0xff]
  %v539 = vadd.f32 %v538, %v483
  %v540 = vxor.u32 %v539, 2147483648
  %v541 = vmul.f32 %v540, 1.442695
  %v542 = vpow.pop %v541
  %v543 = vadd.f32 %v542, 1.0
  %v544 = vrcp.pop %v543
  %v545 = vmul.f32 %v543, %v544
  %v546 = vsub.f32 1.0, %v545
  %v547 = vmul.f32 %v544, %v546
  %v548 = vadd.f32 %v544, %v547
  %vm549 = vweird.f32 %v543
  %vm550 = vweird.f32 %v544
  %vm551 = vmor %vm549, %vm550
  %v552 = vsel %vm551, %v544, %v548
  %v553 = vand.u32 2147483647, %v543
  %vm554 = vcmp.eq.f32.partialorder %v553, 8.507059e+37
  %v555 = vand.u32 %v543, 2147483648
  %v556 = vor.u32 1.1754944e-38, %v555
  %v557 = vsel %vm554, %v556, %v552
  %v558 = vmul.f32 1.0, %v557
  %v559 = vtanh.pop %v539
  %v560 = vmul.f32 %v558, %v453
  %562 = vrot.lane.b32.xlu0 %v559, 64
  %v563 = vpop.permute.xlu0 %562
  %v565 = vmul.f32 %v558, %v563
  %567 = vrot.lane.b32.xlu0 %v565, 32
  %v568 = vpop.permute.xlu0 %567
  %v570 = vadd.f32 %v560, %v568
  %v571 = vtanh.pop %v570
  %573 = vrot.lane.b32.xlu0 %v571, 64
  %v574 = vpop.permute.xlu0 %573
  %v576 = vmul.f32 %v558, %v574
  %578 = vrot.lane.b32.xlu0 %v576, 32
  %v579 = vpop.permute.xlu0 %578
  %582 = vrot.lane.b32.xlu0 %v536, 64
  %v583 = vpop.permute.xlu0 %582
  %v585 = vsel %vm75, %v579, %v583
  %v586 = vpack.c.bf16 %v585, %v585
  %v588 = vsel %vm118, %v586, 0
  %590 = vmatpush.bf16.msra.mxu0 0
  %591 = vmatpush.bf16.msra.mxu0 0
  %592 = vmatpush.bf16.msra.mxu0 0
  %593 = vmatpush.bf16.msra.mxu0 0
  %594 = vmatpush.bf16.msra.mxu0 %v108
  %595 = vmatpush.bf16.msra.mxu0 %v106
  %596 = vmatpush.bf16.msra.mxu0 %v104
  %597 = vmatpush.bf16.msra.mxu0 %v102
  %598 = vmatmul.bf16.gmra.mxu0 %v588
  %v599 = vpop.f32.mrf.mxu0
  %v600 = vadd.f32 0.0, %v599
  %v601 = vpop.f32.mrf.mxu0
  %602 = vdwg.mxu0
  %603 = vmatpush.bf16.msra.mxu0 0
  %604 = vmatpush.bf16.msra.mxu0 0
  %605 = vmatpush.bf16.msra.mxu0 0
  %606 = vmatpush.bf16.msra.mxu0 0
  %607 = vmatpush.bf16.msra.mxu0 %v109
  %608 = vmatpush.bf16.msra.mxu0 %v107
  %609 = vmatpush.bf16.msra.mxu0 %v105
  %610 = vmatpush.bf16.msra.mxu0 %v103
  %611 = vmatmul.bf16.gmra.mxu0 %v588
  %v612 = vpop.f32.mrf.mxu0
  %v613 = vadd.f32 0.0, %v612
  %v614 = vpop.f32.mrf.mxu0
  %615 = vdwg.mxu0
  %v616 = vadd.f32 %v613, %v31
  %v617 = vxor.u32 %v616, 2147483648
  %v618 = vmul.f32 %v617, 1.442695
  %v619 = vpow.pop %v618
  %v620 = vadd.f32 %v619, 1.0
  %v621 = vrcp.pop %v620
  %v622 = vmul.f32 %v620, %v621
  %v623 = vsub.f32 1.0, %v622
  %v624 = vmul.f32 %v621, %v623
  %v625 = vadd.f32 %v621, %v624
  %vm626 = vweird.f32 %v620
  %vm627 = vweird.f32 %v621
  %vm628 = vmor %vm626, %vm627
  %v629 = vsel %vm628, %v621, %v625
  %v630 = vand.u32 2147483647, %v620
  %vm631 = vcmp.eq.f32.partialorder %v630, 8.507059e+37
  %v632 = vand.u32 %v620, 2147483648
  %v633 = vor.u32 1.1754944e-38, %v632
  %v634 = vsel %vm631, %v633, %v629
  %v635 = vmul.f32 1.0, %v634
  %v636 = vtanh.pop %v616
  %v637 = vmul.f32 %v635, %v530
  %639 = vrot.lane.b32.xlu0 %v636, 64
  %v640 = vpop.permute.xlu0 %639
  %v642 = vmul.f32 %v635, %v640
  %644 = vrot.lane.b32.xlu0 %v642, 32
  %v645 = vpop.permute.xlu0 %644
  %v647 = vadd.f32 %v637, %v645
  %v648 = vtanh.pop %v647
  %650 = vrot.lane.b32.xlu0 %v648, 64
  %v651 = vpop.permute.xlu0 %650
  %v653 = vmul.f32 %v635, %v651
  %s654 = scalar_lea.vmem %s0, 40
  %v655 = vld [vmem:[%s654] sm:$0xff]
  %v656 = vadd.f32 %v655, %v600
  %v657 = vxor.u32 %v656, 2147483648
  %v658 = vmul.f32 %v657, 1.442695
  %v659 = vpow.pop %v658
  %v660 = vadd.f32 %v659, 1.0
  %v661 = vrcp.pop %v660
  %v662 = vmul.f32 %v660, %v661
  %v663 = vsub.f32 1.0, %v662
  %v664 = vmul.f32 %v661, %v663
  %v665 = vadd.f32 %v661, %v664
  %vm666 = vweird.f32 %v660
  %vm667 = vweird.f32 %v661
  %vm668 = vmor %vm666, %vm667
  %v669 = vsel %vm668, %v661, %v665
  %v670 = vand.u32 2147483647, %v660
  %vm671 = vcmp.eq.f32.partialorder %v670, 8.507059e+37
  %v672 = vand.u32 %v660, 2147483648
  %v673 = vor.u32 1.1754944e-38, %v672
  %v674 = vsel %vm671, %v673, %v669
  %v675 = vmul.f32 1.0, %v674
  %v676 = vtanh.pop %v656
  %v677 = vmul.f32 %v675, %v570
  %679 = vrot.lane.b32.xlu0 %v676, 64
  %v680 = vpop.permute.xlu0 %679
  %v682 = vmul.f32 %v675, %v680
  %684 = vrot.lane.b32.xlu0 %v682, 32
  %v685 = vpop.permute.xlu0 %684
  %v687 = vadd.f32 %v677, %v685
  %v688 = vtanh.pop %v687
  %690 = vrot.lane.b32.xlu0 %v688, 64
  %v691 = vpop.permute.xlu0 %690
  %v693 = vmul.f32 %v675, %v691
  %695 = vrot.lane.b32.xlu0 %v693, 32
  %v696 = vpop.permute.xlu0 %695
  %699 = vrot.lane.b32.xlu0 %v653, 64
  %v700 = vpop.permute.xlu0 %699
  %v702 = vsel %vm75, %v696, %v700
  %v703 = vpack.c.bf16 %v702, %v702
  %v705 = vsel %vm118, %v703, 0
  %707 = vmatpush.bf16.msra.mxu0 0
  %708 = vmatpush.bf16.msra.mxu0 0
  %709 = vmatpush.bf16.msra.mxu0 0
  %710 = vmatpush.bf16.msra.mxu0 0
  %711 = vmatpush.bf16.msra.mxu0 %v108
  %712 = vmatpush.bf16.msra.mxu0 %v106
  %713 = vmatpush.bf16.msra.mxu0 %v104
  %714 = vmatpush.bf16.msra.mxu0 %v102
  %715 = vmatmul.bf16.gmra.mxu0 %v705
  %v716 = vpop.f32.mrf.mxu0
  %v717 = vadd.f32 0.0, %v716
  %v718 = vpop.f32.mrf.mxu0
  %719 = vdwg.mxu0
  %720 = vmatpush.bf16.msra.mxu0 0
  %721 = vmatpush.bf16.msra.mxu0 0
  %722 = vmatpush.bf16.msra.mxu0 0
  %723 = vmatpush.bf16.msra.mxu0 0
  %724 = vmatpush.bf16.msra.mxu0 %v109
  %725 = vmatpush.bf16.msra.mxu0 %v107
  %726 = vmatpush.bf16.msra.mxu0 %v105
  %727 = vmatpush.bf16.msra.mxu0 %v103
  %728 = vmatmul.bf16.gmra.mxu0 %v705
  %v729 = vpop.f32.mrf.mxu0
  %v730 = vadd.f32 0.0, %v729
  %v731 = vpop.f32.mrf.mxu0
  %732 = vdwg.mxu0
  %v733 = vadd.f32 %v730, %v31
  %v734 = vxor.u32 %v733, 2147483648
  %v735 = vmul.f32 %v734, 1.442695
  %v736 = vpow.pop %v735
  %v737 = vadd.f32 %v736, 1.0
  %v738 = vrcp.pop %v737
  %v739 = vmul.f32 %v737, %v738
  %v740 = vsub.f32 1.0, %v739
  %v741 = vmul.f32 %v738, %v740
  %v742 = vadd.f32 %v738, %v741
  %vm743 = vweird.f32 %v737
  %vm744 = vweird.f32 %v738
  %vm745 = vmor %vm743, %vm744
  %v746 = vsel %vm745, %v738, %v742
  %v747 = vand.u32 2147483647, %v737
  %vm748 = vcmp.eq.f32.partialorder %v747, 8.507059e+37
  %v749 = vand.u32 %v737, 2147483648
  %v750 = vor.u32 1.1754944e-38, %v749
  %v751 = vsel %vm748, %v750, %v746
  %v752 = vmul.f32 1.0, %v751
  %v753 = vtanh.pop %v733
  %v754 = vmul.f32 %v752, %v647
  %756 = vrot.lane.b32.xlu0 %v753, 64
  %v757 = vpop.permute.xlu0 %756
  %v759 = vmul.f32 %v752, %v757
  %761 = vrot.lane.b32.xlu0 %v759, 32
  %v762 = vpop.permute.xlu0 %761
  %v764 = vadd.f32 %v754, %v762
  %v765 = vtanh.pop %v764
  %767 = vrot.lane.b32.xlu0 %v765, 64
  %v768 = vpop.permute.xlu0 %767
  %v770 = vmul.f32 %v752, %v768
  %s771 = scalar_lea.vmem %s0, 48
  %v772 = vld [vmem:[%s771] sm:$0xff]
  %v773 = vadd.f32 %v772, %v717
  %v774 = vxor.u32 %v773, 2147483648
  %v775 = vmul.f32 %v774, 1.442695
  %v776 = vpow.pop %v775
  %v777 = vadd.f32 %v776, 1.0
  %v778 = vrcp.pop %v777
  %v779 = vmul.f32 %v777, %v778
  %v780 = vsub.f32 1.0, %v779
  %v781 = vmul.f32 %v778, %v780
  %v782 = vadd.f32 %v778, %v781
  %vm783 = vweird.f32 %v777
  %vm784 = vweird.f32 %v778
  %vm785 = vmor %vm783, %vm784
  %v786 = vsel %vm785, %v778, %v782
  %v787 = vand.u32 2147483647, %v777
  %vm788 = vcmp.eq.f32.partialorder %v787, 8.507059e+37
  %v789 = vand.u32 %v777, 2147483648
  %v790 = vor.u32 1.1754944e-38, %v789
  %v791 = vsel %vm788, %v790, %v786
  %v792 = vmul.f32 1.0, %v791
  %v793 = vtanh.pop %v773
  %v794 = vmul.f32 %v792, %v687
  %796 = vrot.lane.b32.xlu0 %v793, 64
  %v797 = vpop.permute.xlu0 %796
  %v799 = vmul.f32 %v792, %v797
  %801 = vrot.lane.b32.xlu0 %v799, 32
  %v802 = vpop.permute.xlu0 %801
  %v804 = vadd.f32 %v794, %v802
  %v805 = vtanh.pop %v804
  %807 = vrot.lane.b32.xlu0 %v805, 64
  %v808 = vpop.permute.xlu0 %807
  %v810 = vmul.f32 %v792, %v808
  %812 = vrot.lane.b32.xlu0 %v810, 32
  %v813 = vpop.permute.xlu0 %812
  %816 = vrot.lane.b32.xlu0 %v770, 64
  %v817 = vpop.permute.xlu0 %816
  %v819 = vsel %vm75, %v813, %v817
  %v820 = vpack.c.bf16 %v819, %v819
  %v822 = vsel %vm118, %v820, 0
  %824 = vmatpush.bf16.msra.mxu0 0
  %825 = vmatpush.bf16.msra.mxu0 0
  %826 = vmatpush.bf16.msra.mxu0 0
  %827 = vmatpush.bf16.msra.mxu0 0
  %828 = vmatpush.bf16.msra.mxu0 %v108
  %829 = vmatpush.bf16.msra.mxu0 %v106
  %830 = vmatpush.bf16.msra.mxu0 %v104
  %831 = vmatpush.bf16.msra.mxu0 %v102
  %832 = vmatmul.bf16.gmra.mxu0 %v822
  %v833 = vpop.f32.mrf.mxu0
  %v834 = vadd.f32 0.0, %v833
  %v835 = vpop.f32.mrf.mxu0
  %836 = vdwg.mxu0
  %837 = vmatpush.bf16.msra.mxu0 0
  %838 = vmatpush.bf16.msra.mxu0 0
  %839 = vmatpush.bf16.msra.mxu0 0
  %840 = vmatpush.bf16.msra.mxu0 0
  %841 = vmatpush.bf16.msra.mxu0 %v109
  %842 = vmatpush.bf16.msra.mxu0 %v107
  %843 = vmatpush.bf16.msra.mxu0 %v105
  %844 = vmatpush.bf16.msra.mxu0 %v103
  %845 = vmatmul.bf16.gmra.mxu0 %v822
  %v846 = vpop.f32.mrf.mxu0
  %v847 = vadd.f32 0.0, %v846
  %v848 = vpop.f32.mrf.mxu0
  %849 = vdwg.mxu0
  %v850 = vadd.f32 %v847, %v31
  %v851 = vxor.u32 %v850, 2147483648
  %v852 = vmul.f32 %v851, 1.442695
  %v853 = vpow.pop %v852
  %v854 = vadd.f32 %v853, 1.0
  %v855 = vrcp.pop %v854
  %v856 = vmul.f32 %v854, %v855
  %v857 = vsub.f32 1.0, %v856
  %v858 = vmul.f32 %v855, %v857
  %v859 = vadd.f32 %v855, %v858
  %vm860 = vweird.f32 %v854
  %vm861 = vweird.f32 %v855
  %vm862 = vmor %vm860, %vm861
  %v863 = vsel %vm862, %v855, %v859
  %v864 = vand.u32 2147483647, %v854
  %vm865 = vcmp.eq.f32.partialorder %v864, 8.507059e+37
  %v866 = vand.u32 %v854, 2147483648
  %v867 = vor.u32 1.1754944e-38, %v866
  %v868 = vsel %vm865, %v867, %v863
  %v869 = vmul.f32 1.0, %v868
  %v870 = vtanh.pop %v850
  %v871 = vmul.f32 %v869, %v764
  %873 = vrot.lane.b32.xlu0 %v870, 64
  %v874 = vpop.permute.xlu0 %873
  %v876 = vmul.f32 %v869, %v874
  %878 = vrot.lane.b32.xlu0 %v876, 32
  %v879 = vpop.permute.xlu0 %878
  %v881 = vadd.f32 %v871, %v879
  %v882 = vtanh.pop %v881
  %884 = vrot.lane.b32.xlu0 %v882, 64
  %v885 = vpop.permute.xlu0 %884
  %v887 = vmul.f32 %v869, %v885
  %s888 = scalar_lea.vmem %s0, 56
  %v889 = vld [vmem:[%s888] sm:$0xff]
  %v890 = vadd.f32 %v889, %v834
  %v891 = vxor.u32 %v890, 2147483648
  %v892 = vmul.f32 %v891, 1.442695
  %v893 = vpow.pop %v892
  %v894 = vadd.f32 %v893, 1.0
  %v895 = vrcp.pop %v894
  %v896 = vmul.f32 %v894, %v895
  %v897 = vsub.f32 1.0, %v896
  %v898 = vmul.f32 %v895, %v897
  %v899 = vadd.f32 %v895, %v898
  %vm900 = vweird.f32 %v894
  %vm901 = vweird.f32 %v895
  %vm902 = vmor %vm900, %vm901
  %v903 = vsel %vm902, %v895, %v899
  %v904 = vand.u32 2147483647, %v894
  %vm905 = vcmp.eq.f32.partialorder %v904, 8.507059e+37
  %v906 = vand.u32 %v894, 2147483648
  %v907 = vor.u32 1.1754944e-38, %v906
  %v908 = vsel %vm905, %v907, %v903
  %v909 = vmul.f32 1.0, %v908
  %v910 = vtanh.pop %v890
  %v911 = vmul.f32 %v909, %v804
  %913 = vrot.lane.b32.xlu0 %v910, 64
  %v914 = vpop.permute.xlu0 %913
  %v916 = vmul.f32 %v909, %v914
  %918 = vrot.lane.b32.xlu0 %v916, 32
  %v919 = vpop.permute.xlu0 %918
  %v921 = vadd.f32 %v911, %v919
  %v922 = vtanh.pop %v921
  %924 = vrot.lane.b32.xlu0 %v922, 64
  %v925 = vpop.permute.xlu0 %924
  %v927 = vmul.f32 %v909, %v925
  %929 = vrot.lane.b32.xlu0 %v927, 32
  %v930 = vpop.permute.xlu0 %929
  %933 = vrot.lane.b32.xlu0 %v887, 64
  %v934 = vpop.permute.xlu0 %933
  %v936 = vsel %vm75, %v930, %v934
  %v937 = vpack.c.bf16 %v936, %v936
  %v939 = vsel %vm118, %v937, 0
  %941 = vmatpush.bf16.msra.mxu0 0
  %942 = vmatpush.bf16.msra.mxu0 0
  %943 = vmatpush.bf16.msra.mxu0 0
  %944 = vmatpush.bf16.msra.mxu0 0
  %945 = vmatpush.bf16.msra.mxu0 %v109
  %946 = vmatpush.bf16.msra.mxu0 %v107
  %947 = vmatpush.bf16.msra.mxu0 %v105
  %948 = vmatpush.bf16.msra.mxu0 %v103
  %949 = vmatmul.bf16.gmra.mxu0 %v939
  %v950 = vpop.f32.mrf.mxu0
  %v951 = vadd.f32 0.0, %v950
  %v952 = vpop.f32.mrf.mxu0
  %953 = vdwg.mxu0
  %v954 = vadd.f32 %v951, %v31
  %v955 = vxor.u32 %v954, 2147483648
  %v956 = vmul.f32 %v955, 1.442695
  %v957 = vpow.pop %v956
  %v958 = vadd.f32 %v957, 1.0
  %v959 = vrcp.pop %v958
  %v960 = vmul.f32 %v958, %v959
  %v961 = vsub.f32 1.0, %v960
  %v962 = vmul.f32 %v959, %v961
  %v963 = vadd.f32 %v959, %v962
  %vm964 = vweird.f32 %v958
  %vm965 = vweird.f32 %v959
  %vm966 = vmor %vm964, %vm965
  %v967 = vsel %vm966, %v959, %v963
  %v968 = vand.u32 2147483647, %v958
  %vm969 = vcmp.eq.f32.partialorder %v968, 8.507059e+37
  %v970 = vand.u32 %v958, 2147483648
  %v971 = vor.u32 1.1754944e-38, %v970
  %v972 = vsel %vm969, %v971, %v967
  %v973 = vmul.f32 1.0, %v972
  %v974 = vtanh.pop %v954
  %v975 = vmul.f32 %v973, %v881
  %977 = vrot.lane.b32.xlu0 %v974, 64
  %v978 = vpop.permute.xlu0 %977
  %v980 = vmul.f32 %v973, %v978
  %982 = vrot.lane.b32.xlu0 %v980, 32
  %v983 = vpop.permute.xlu0 %982
  %v985 = vadd.f32 %v975, %v983
  %v986 = vtanh.pop %v985
  %988 = vrot.lane.b32.xlu0 %v986, 64
  %v989 = vpop.permute.xlu0 %988
  %v991 = vmul.f32 %v973, %v989
  %v992 = vpack.c.bf16 %v991, %v991
  %v993 = vld [vmem:[%s3] sm:$0xf]
  %v994 = vld [vmem:[%s3 + $0x4] sm:$0xf]
  %v995 = vld [vmem:[%s3 + $0x8] sm:$0xf]
  %v996 = vld [vmem:[%s3 + $0xc] sm:$0xf]
  %v997 = vld [vmem:[%s4] sm:$0x1]
  %v999 = vperm.slane %v997, 0
  %1002 = vrot.lane.b32.xlu0 %v992, 32
  %v1003 = vpop.permute.xlu0 %1002
  %v1008 = vunpack.c.l.b16 %v993
  %v1009 = vunpack.c.l.b16 %v994
  %v1010 = vunpack.c.l.b16 %v995
  %v1011 = vunpack.c.l.b16 %v996
  %v1012 = vpack.c.b16 %v1009, %v1008
  %v1013 = vpack.c.b16 %v1011, %v1010
  %v1017 = vsel %vm75, %v1003, 0
  %1019 = vmatpush.bf16.msra.mxu0 0
  %1020 = vmatpush.bf16.msra.mxu0 0
  %1021 = vmatpush.bf16.msra.mxu0 0
  %1022 = vmatpush.bf16.msra.mxu0 0
  %1023 = vmatpush.bf16.msra.mxu0 0
  %1024 = vmatpush.bf16.msra.mxu0 0
  %1025 = vmatpush.bf16.msra.mxu0 %v1013
  %1026 = vmatpush.bf16.msra.mxu0 %v1012
  %1027 = vmatmul.bf16.gmra.mxu0 %v1017
  %v1028 = vpop.f32.mrf.mxu0
  %v1029 = vadd.f32 %v999, %v1028
  %v1030 = vpop.f32.mrf.mxu0
  %1031 = vdwg.mxu0
  %1032 = vst [vmem:[%s5] sm:$0xff] %v1029
  // Predicated region
  $region22: #{stacked_lstm_forward.1} parent=0 // pred_check
    _
  $region23: #{stacked_lstm_forward.1} parent=0 // pred_check_branch
    %1034 = sbr.rel (0) target = $region25
  $region24: #{stacked_lstm_forward.1} parent=0 // pred_region
    _
  $region25: #{stacked_lstm_forward.1} parent=0 // pred_fallthru
    _
  // Predicated region
  $region26: #{stacked_lstm_forward.1} parent=0 // pred_check
    _
  $region27: #{stacked_lstm_forward.1} parent=0 // pred_check_branch
    %1036 = sbr.rel (0) target = $region29
  $region28: #{stacked_lstm_forward.1} parent=0 // pred_region
    _
  $region29: #{stacked_lstm_forward.1} parent=0 // pred_fallthru
    _

</llo_original>
